<compile_context>
chip_gen: v6e
topology: v6e:2x2x1
jax: 0.10.0
libtpu: 0.0.40
codegen_flags: <defaults>
</compile_context>

<pallas_src>
import functools
import math

import jax
import jax.numpy as jnp
from jax.experimental import pallas as pl
from jax.experimental.pallas import tpu as pltpu


# ------------------------------ tiling helpers -------------------------------

# Conservative per-step budget: fits the default scoped VMEM on v5e (16 MiB), v6e/v7x (32 MiB)
# without needing vmem_limit_bytes overrides.
_VMEM_BUDGET_BYTES = 12 * 1024 * 1024


@functools.lru_cache(maxsize=None)
def _num_tensorcores():
    """TensorCores per chip (v7x has 2, v5e/v6e have 1); safe fallback to 1."""
    try:
        info = pltpu.get_tpu_info()
        return int(getattr(info, "num_cores", 1) or 1)
    except Exception:
        return 1


def _largest_pow2_divisor(m, cap):
    t = 1
    while t * 2 <= cap and m % (t * 2) == 0:
        t *= 2
    return t


def _pick_row_tile(m, row_bytes=0, cap=1024):
    """Largest power-of-two row tile dividing m, VMEM-budgeted (x2 for double buffering).

    No blind halving: the 'give the megacore >=2 steps' split only applies when the chip
    actually has >1 TensorCore AND the tile would stay at/above the HBM-roofline knee.
    """
    t = _largest_pow2_divisor(m, min(cap, m))
    if row_bytes:
        while t > 8 and 2 * t * row_bytes > _VMEM_BUDGET_BYTES:
            t //= 2
    if _num_tensorcores() > 1 and t == m and t >= 1024:
        t //= 2
    if t % 8 != 0 and t != m:
        t = m                      # (8,128) rule: second-minor block dim 8-aligned or full extent
    return t


def _pick_batch_tile(bb, item_bytes=0, cap=512):
    """Attention batch tile: largest power-of-two divisor within a VMEM budget.

    Fat steps amortize the ~0.35us/step grid overhead; this dim is not one of the block's
    last two dims so it carries no (8,128) constraint.
    """
    t = _largest_pow2_divisor(bb, min(cap, bb))
    if item_bytes:
        while t > 1 and 2 * t * item_bytes > _VMEM_BUDGET_BYTES:
            t //= 2
    return max(t, 1)


# ------------------------------ Pallas kernels --------------------------------

def _linear_kernel(x_ref, w_ref, b_ref, o_ref, *, activation):
    x = x_ref[...].astype(jnp.bfloat16)
    w = w_ref[...].astype(jnp.bfloat16)
    y = jnp.dot(x, w, preferred_element_type=jnp.float32) + b_ref[...]
    if activation == "relu":
        y = jnp.maximum(y, 0.0)
    o_ref[...] = y.astype(o_ref.dtype)


def linear_pallas(x, w, b, activation=None, out_dtype=jnp.float32):
    """y = act(x @ w + b); x: (M, K), w: (K, N) (bf16 or f32), b: (N,). MXU bf16, f32 acc.

    Use out_dtype=bf16 for activations whose consumer immediately re-casts to bf16
    (halves the HBM writeback + reload of the inter-kernel activation).
    """
    m, kdim = x.shape
    n = w.shape[1]
    row_bytes = kdim * x.dtype.itemsize + n * jnp.dtype(out_dtype).itemsize
    tm = _pick_row_tile(m, row_bytes)
    kern = functools.partial(_linear_kernel, activation=activation)
    return pl.pallas_call(
        kern,
        out_shape=jax.ShapeDtypeStruct((m, n), out_dtype),
        grid_spec=pltpu.PrefetchScalarGridSpec(
            num_scalar_prefetch=0,
            grid=(m // tm,),
            in_specs=[
                pl.BlockSpec((tm, kdim), lambda i: (i, 0)),
                pl.BlockSpec((kdim, n), lambda i: (0, 0)),
                pl.BlockSpec((1, n), lambda i: (0, 0)),
            ],
            out_specs=pl.BlockSpec((tm, n), lambda i: (i, 0)),
        ),
        compiler_params=pltpu.CompilerParams(dimension_semantics=("parallel",)),
    )(x, w, b.reshape(1, n))


def _linear_add_ln_kernel(x_ref, w_ref, b_ref, r_ref, g_ref, beta_ref, o_ref):
    # fused: y = LayerNorm(x @ w + b + residual)  (attention output-projection epilogue)
    x = x_ref[...].astype(jnp.bfloat16)
    w = w_ref[...].astype(jnp.bfloat16)
    y = jnp.dot(x, w, preferred_element_type=jnp.float32) + b_ref[...]
    y = y + r_ref[...]
    mu = jnp.mean(y, axis=-1, keepdims=True)
    var = jnp.mean(jnp.square(y - mu), axis=-1, keepdims=True)
    o_ref[...] = ((y - mu) * jax.lax.rsqrt(var + 1e-5)) * g_ref[...] + beta_ref[...]


def linear_add_ln_pallas(x, w, b, res, gamma, beta):
    m, kdim = x.shape
    n = w.shape[1]
    row_bytes = kdim * x.dtype.itemsize + 2 * n * 4
    tm = _pick_row_tile(m, row_bytes)
    return pl.pallas_call(
        _linear_add_ln_kernel,
        out_shape=jax.ShapeDtypeStruct((m, n), jnp.float32),
        grid_spec=pltpu.PrefetchScalarGridSpec(
            num_scalar_prefetch=0,
            grid=(m // tm,),
            in_specs=[
                pl.BlockSpec((tm, kdim), lambda i: (i, 0)),
                pl.BlockSpec((kdim, n), lambda i: (0, 0)),
                pl.BlockSpec((1, n), lambda i: (0, 0)),
                pl.BlockSpec((tm, n), lambda i: (i, 0)),
                pl.BlockSpec((1, n), lambda i: (0, 0)),
                pl.BlockSpec((1, n), lambda i: (0, 0)),
            ],
            out_specs=pl.BlockSpec((tm, n), lambda i: (i, 0)),
        ),
        compiler_params=pltpu.CompilerParams(dimension_semantics=("parallel",)),
    )(x, w, b.reshape(1, n), res, gamma.reshape(1, n), beta.reshape(1, n))


def _ffn_add_ln_kernel(x_ref, w1_ref, b1_ref, w2_ref, b2_ref, g_ref, beta_ref, o_ref):
    # fused: y = LayerNorm(relu(x @ w1 + b1) @ w2 + b2 + x)
    x = x_ref[...]
    h = jnp.dot(x.astype(jnp.bfloat16), w1_ref[...].astype(jnp.bfloat16),
                preferred_element_type=jnp.float32) + b1_ref[...]
    h = jnp.maximum(h, 0.0)
    y = jnp.dot(h.astype(jnp.bfloat16), w2_ref[...].astype(jnp.bfloat16),
                preferred_element_type=jnp.float32) + b2_ref[...]
    y = y + x
    mu = jnp.mean(y, axis=-1, keepdims=True)
    var = jnp.mean(jnp.square(y - mu), axis=-1, keepdims=True)
    o_ref[...] = ((y - mu) * jax.lax.rsqrt(var + 1e-5)) * g_ref[...] + beta_ref[...]


def ffn_add_ln_pallas(x, w1, b1, w2, b2, gamma, beta):
    m, d = x.shape
    hdim = w1.shape[1]
    row_bytes = 2 * d * 4 + hdim * 4
    tm = _pick_row_tile(m, row_bytes)
    # TODO(synk): for large d_model (v7x 64 MiB VMEM) add a grid axis over `hdim` with a VMEM
    #             accumulator instead of keeping the full (d,4d)/(4d,d) weights resident.
    return pl.pallas_call(
        _ffn_add_ln_kernel,
        out_shape=jax.ShapeDtypeStruct((m, d), jnp.float32),
        grid_spec=pltpu.PrefetchScalarGridSpec(
            num_scalar_prefetch=0,
            grid=(m // tm,),
            in_specs=[
                pl.BlockSpec((tm, d), lambda i: (i, 0)),
                pl.BlockSpec((d, hdim), lambda i: (0, 0)),
                pl.BlockSpec((1, hdim), lambda i: (0, 0)),
                pl.BlockSpec((hdim, d), lambda i: (0, 0)),
                pl.BlockSpec((1, d), lambda i: (0, 0)),
                pl.BlockSpec((1, d), lambda i: (0, 0)),
                pl.BlockSpec((1, d), lambda i: (0, 0)),
            ],
            out_specs=pl.BlockSpec((tm, d), lambda i: (i, 0)),
        ),
        compiler_params=pltpu.CompilerParams(dimension_semantics=("parallel",)),
    )(x, w1, b1.reshape(1, hdim), w2, b2.reshape(1, d),
      gamma.reshape(1, d), beta.reshape(1, d))


def _mha_fused_kernel(qkv_ref, s_ref, o_ref, *, nh, dh, scale):
    """All heads of one batch block: (QK^T + Shaw bias) -> softmax -> PV, merged-head store.

    Heads are static lane slices of the resident fused qkv block (no XLA split/merge).
    Matmuls run bf16 on the MXU with f32 accumulation; softmax statistics stay f32; the
    softmax normalization uses pl.reciprocal(approx=True) (EUP slot). Per-head contexts are
    concatenated on the lane dim so the output block is written with a single lane-dense
    store of width nh*dh instead of nh masked stores of width dh.
    """
    d_model = nh * dh
    qkv = qkv_ref[...]                       # (tb, lq, 3*d_model) bf16
    s = s_ref[...]                           # (lq, lk, dh) f32, shared across heads
    ctx_heads = []
    for h in range(nh):                      # static unroll (nh is small)
        lo = h * dh
        q = qkv[:, :, lo:lo + dh]
        k = qkv[:, :, d_model + lo:d_model + lo + dh]
        v = qkv[:, :, 2 * d_model + lo:2 * d_model + lo + dh]
        content = jnp.einsum('bqd,bkd->bqk', q, k, preferred_element_type=jnp.float32)
        # Shaw-style relative bias fused in-kernel: bias[b,q,k] = sum_d q[b,q,d] * s[q,k,d]
        # (broadcast-multiply-reduce on the VPU; no block-diagonal matrix, no extra
        #  pallas_call, no f32 (BH,Lq,Lk) HBM round trip).
        # TODO(synk): at large kernel_size reformulate as a q-batched MXU dot_general.
        bias = jnp.sum(q.astype(jnp.float32)[:, :, None, :] * s[None, :, :, :], axis=-1)
        scores = (content + bias) * scale
        scores = scores - jnp.max(scores, axis=-1, keepdims=True)
        p = jnp.exp(scores)
        p = p * pl.reciprocal(jnp.sum(p, axis=-1, keepdims=True), approx=True)
        ctx_heads.append(jnp.einsum('bqk,bkd->bqd', p.astype(jnp.bfloat16), v,
                                    preferred_element_type=jnp.float32))
    o_ref[...] = jnp.concatenate(ctx_heads, axis=-1).astype(o_ref.dtype)


def attention_fused_pallas(qkv, s_table, *, nh, dh):
    """qkv: (bb, lq, 3*d_model) fused projection (bf16); s_table: (lq, lk, dh) structure table.

    Single kernel per layer, grid over batch blocks only; returns the merged-head context
    (bb, lq, d_model) in bf16.
    """
    bb, lq, three_d = qkv.shape
    d_model = nh * dh
    assert three_d == 3 * d_model
    lk = s_table.shape[1]
    item_bytes = lq * (3 * d_model * qkv.dtype.itemsize + d_model * 2) + lq * lk * dh * 4
    tb = _pick_batch_tile(bb, item_bytes)
    kern = functools.partial(_mha_fused_kernel, nh=nh, dh=dh, scale=1.0 / math.sqrt(dh))
    return pl.pallas_call(
        kern,
        out_shape=jax.ShapeDtypeStruct((bb, lq, d_model), jnp.bfloat16),
        grid_spec=pltpu.PrefetchScalarGridSpec(
            num_scalar_prefetch=0,
            grid=(bb // tb,),
            in_specs=[
                pl.BlockSpec((tb, lq, 3 * d_model), lambda i: (i, 0, 0)),
                pl.BlockSpec((lq, lk, dh), lambda i: (0, 0, 0)),
            ],
            out_specs=pl.BlockSpec((tb, lq, d_model), lambda i: (i, 0, 0)),
        ),
        compiler_params=pltpu.CompilerParams(dimension_semantics=("parallel",)),
    )(qkv, s_table)


def _classifier_kernel(x_ref, w_ref, b_ref, o_ref):
    x = x_ref[...].astype(jnp.bfloat16)
    w = w_ref[...].astype(jnp.bfloat16)
    y = jnp.dot(x, w, preferred_element_type=jnp.float32) + b_ref[...]
    # lane-dense store: tokens on the minor (lane) dim instead of num_classes (<<128);
    # the (tokens, classes) view is recovered with a free transpose in the JAX glue.
    o_ref[...] = y.T.astype(o_ref.dtype)


def classifier_pallas(x, w, b):
    m, kdim = x.shape
    n = w.shape[1]
    if m % 128 == 0:            # token tile lands on the lane dim -> multiple of 128
        tm = 128
        while tm * 2 <= min(m, 1024) and m % (tm * 2) == 0:
            tm *= 2
    else:
        tm = m
    return pl.pallas_call(
        _classifier_kernel,
        out_shape=jax.ShapeDtypeStruct((n, m), jnp.float32),
        grid_spec=pltpu.PrefetchScalarGridSpec(
            num_scalar_prefetch=0,
            grid=(m // tm,),
            in_specs=[
                pl.BlockSpec((tm, kdim), lambda i: (i, 0)),
                pl.BlockSpec((kdim, n), lambda i: (0, 0)),
                pl.BlockSpec((1, n), lambda i: (0, 0)),
            ],
            out_specs=pl.BlockSpec((n, tm), lambda i: (0, i)),
        ),
        compiler_params=pltpu.CompilerParams(dimension_semantics=("parallel",)),
    )(x, w, b.reshape(1, n))


# --------------------------------- JAX glue -----------------------------------

def unfold_nchw(x, k, s):
    """F.unfold semantics for non-overlapping patches (k == s). x: (N, C, H, W)."""
    n, c, h, w = x.shape
    assert k == s and h % k == 0 and w % k == 0
    nh, nw = h // k, w // k
    p = x.reshape(n, c, nh, k, nw, k)
    p = jnp.transpose(p, (0, 1, 3, 5, 2, 4))     # (N, C, k, k, nh, nw)
    return p.reshape(n, c * k * k, nh * nw)


def fold_nchw(x, out_hw, k, s):
    """F.fold semantics for non-overlapping patches (k == s). x: (N, C*k*k, L)."""
    n, ckk, _ = x.shape
    h, w = out_hw
    c = ckk // (k * k)
    nh, nw = h // k, w // k
    p = x.reshape(n, c, k, k, nh, nw)
    p = jnp.transpose(p, (0, 1, 4, 2, 5, 3))     # (N, C, nh, k, nw, k)
    return p.reshape(n, c, h, w)


def position_encoding_2d(pe, size, max_size):
    """Matches PositionEncoding2D.forward(size): (size^2, size^2, dim).

    Note: the clipped index can reach 2*max_size only when size > max_size; as called here
    (size == max_size == kernel_size) all indices are in range of the (2*max_size) tables.
    """
    xs = jnp.tile(jnp.arange(size), (size,))
    ys = jnp.repeat(jnp.arange(size), size)
    x_diff = jnp.clip(xs[None, :] - xs[:, None], -max_size, max_size) + max_size
    y_diff = jnp.clip(ys[None, :] - ys[:, None], -max_size, max_size) + max_size
    return pe["x_emb"][x_diff] + pe["y_emb"][y_diff]


# ------------------------------ transformer blocks -----------------------------

def _cross_layer_single_key(layer, x, mem):
    """Cross-attention block specialized for Lk == 1 memory (one embedding token per patch).

    Softmax over a single key is identically 1, so the attention output equals V for every
    query and head: the Q projection, the structure bias and the score/softmax stage are
    mathematically inert and skipped (exact — also removes the approx-reciprocal error the
    generic path would introduce). Only the V half of the fused KV projection, the fused
    out-proj + residual + LN, and the fused FFN + residual + LN remain.
    """
    bb, lq, d_model = x.shape
    x2 = x.reshape(-1, d_model)
    m2 = mem.reshape(-1, d_model)                                # (bb, d_model), Lk == 1
    wv = layer["kv"]["w"][:, d_model:]                           # V half of the fused KV weight
    bv = layer["kv"]["b"][d_model:]
    v2 = linear_pallas(m2, wv, bv, out_dtype=jnp.bfloat16)       # (bb, d_model)
    ctx2 = jnp.broadcast_to(v2[:, None, :], (bb, lq, d_model)).reshape(bb * lq, d_model)
    h2 = linear_add_ln_pallas(ctx2, layer["o"]["w"], layer["o"]["b"],
                              x2, layer["ln1_g"], layer["ln1_b"])
    out2 = ffn_add_ln_pallas(h2, layer["ffn1"]["w"], layer["ffn1"]["b"],
                             layer["ffn2"]["w"], layer["ffn2"]["b"],
                             layer["ln2_g"], layer["ln2_b"])
    return out2.reshape(bb, lq, d_model)


def _self_attn_layer(layer, x, s_table):
    """Post-LN self-attention block: fused QKV (bf16 out) -> single fused-bias multi-head
    attention kernel (batch-gridded, merged-head lane-dense output) -> fused
    out-proj + residual + LN -> fused FFN + residual + LN."""
    bb, lq, d_model = x.shape
    dh = layer["head_size"]
    nh = d_model // dh
    x2 = x.reshape(-1, d_model)
    qkv = linear_pallas(x2, layer["qkv"]["w"], layer["qkv"]["b"], out_dtype=jnp.bfloat16)
    ctx = attention_fused_pallas(qkv.reshape(bb, lq, 3 * d_model), s_table, nh=nh, dh=dh)
    h2 = linear_add_ln_pallas(ctx.reshape(bb * lq, d_model), layer["o"]["w"], layer["o"]["b"],
                              x2, layer["ln1_g"], layer["ln1_b"])
    out2 = ffn_add_ln_pallas(h2, layer["ffn1"]["w"], layer["ffn1"]["b"],
                             layer["ffn2"]["w"], layer["ffn2"]["b"],
                             layer["ln2_g"], layer["ln2_b"])
    return out2.reshape(bb, lq, d_model)


# ---------------------------- parameters & forward -----------------------------

def init_params(key, *, num_classes, input_size, kernel_size, num_layers, hidden_size):
    head = hidden_size // 4
    head2 = input_size // 8
    keys = iter(jax.random.split(key, 64))

    def lin(k, din, dout):
        k1, k2 = jax.random.split(k)
        # matmul weights stored in bf16 (MXU-native rate, half the HBM traffic); biases f32.
        return {"w": (0.05 * jax.random.normal(k1, (din, dout), jnp.float32)).astype(jnp.bfloat16),
                "b": 0.01 * jax.random.normal(k2, (dout,), jnp.float32)}

    def block(k, d_model, head_size, cross):
        ks = jax.random.split(k, 6)
        p = {"head_size": head_size,
             "o": lin(ks[3], d_model, d_model),
             "ln1_g": jnp.ones((d_model,), jnp.float32),
             "ln1_b": jnp.zeros((d_model,), jnp.float32),
             "ffn1": lin(ks[4], d_model, 4 * d_model),
             "ffn2": lin(ks[5], 4 * d_model, d_model),
             "ln2_g": jnp.ones((d_model,), jnp.float32),
             "ln2_b": jnp.zeros((d_model,), jnp.float32)}
        if cross:
            p["q"] = lin(ks[0], d_model, d_model)        # kept for parameter parity; inert for Lk==1
            p["kv"] = lin(ks[1], d_model, 2 * d_model)
        else:
            p["qkv"] = lin(ks[0], d_model, 3 * d_model)
        return p

    return {
        "pixel_embed": lin(next(keys), 3, input_size),
        "linear_map": lin(next(keys), input_size, hidden_size),
        "classifier": lin(next(keys), hidden_size, num_classes),
        "cross": [block(next(keys), input_size, head2, True)],
        "transformer": [block(next(keys), hidden_size, head, False) for _ in range(num_layers)],
        "pe_2d": {"x_emb": 0.05 * jax.random.normal(next(keys), (2 * kernel_size, head), jnp.float32),
                  "y_emb": 0.05 * jax.random.normal(next(keys), (2 * kernel_size, head), jnp.float32)},
        # kept for parameter parity; the Lk==1 cross path makes this bias mathematically inert
        "pe_map": {"x_emb": 0.05 * jax.random.normal(next(keys), (kernel_size ** 2, head2), jnp.float32),
                   "y_emb": 0.05 * jax.random.normal(next(keys), (1, head2), jnp.float32)},
    }


def pixel_decoder_forward(params, embed, x, *, input_size, kernel_size, stride, hidden_size):
    B = embed.shape[0]
    H, W = x.shape[2], x.shape[3]
    k = kernel_size
    L = H * W // stride ** 2

    embed_r = embed.reshape(-1, 1, input_size)                   # (B*L, 1, D): single key per patch

    xh = jnp.transpose(x, (0, 2, 3, 1))                          # NCHW -> NHWC
    xh = linear_pallas(xh.reshape(-1, 3), params["pixel_embed"]["w"],
                       params["pixel_embed"]["b"]).reshape(B, H, W, input_size)
    xh = jnp.transpose(xh, (0, 3, 1, 2))                         # (B, D, H, W)
    xu = unfold_nchw(xh, k, stride)                              # (B, D*k^2, L)
    xu = xu.reshape(B, input_size, k * k, L)
    xu = jnp.transpose(xu, (0, 3, 2, 1))
    xt = xu.reshape(-1, k * k, input_size)                       # (B*L, k^2, D)

    for layer in params["cross"]:
        xt = _cross_layer_single_key(layer, xt, embed_r)

    xt = linear_pallas(xt.reshape(-1, input_size), params["linear_map"]["w"],
                       params["linear_map"]["b"]).reshape(-1, k * k, hidden_size)

    pos_code = position_encoding_2d(params["pe_2d"], k, k)       # (k^2, k^2, hidden//4)
    for layer in params["transformer"]:
        xt = _self_attn_layer(layer, xt, pos_code)

    logits_t = classifier_pallas(xt.reshape(-1, hidden_size),
                                 params["classifier"]["w"], params["classifier"]["b"])
    num_classes = logits_t.shape[0]                              # (C, B*L*k^2)
    lt = logits_t.reshape(num_classes, B, L, k * k)
    lt = jnp.transpose(lt, (1, 0, 3, 2))                         # (B, C, k^2, L)
    lt = lt.reshape(B, num_classes * k * k, L)
    return fold_nchw(lt, (H, W), k, stride)                      # (B, C, H, W)


if __name__ == "__main__":
    NUM_CLASSES, INPUT_SIZE, KERNEL, STRIDE, NUM_LAYERS, HIDDEN = 4, 16, 2, 2, 2, 32
    B, H, W = 2, 8, 8
    L = H * W // STRIDE ** 2

    key = jax.random.PRNGKey(0)
    kp, ke, kx = jax.random.split(key, 3)
    params = init_params(kp, num_classes=NUM_CLASSES, input_size=INPUT_SIZE,
                         kernel_size=KERNEL, num_layers=NUM_LAYERS, hidden_size=HIDDEN)
    embed = jax.random.normal(ke, (B, L, INPUT_SIZE), jnp.float32)
    x = jax.random.normal(kx, (B, 3, H, W), jnp.float32)

    out = pixel_decoder_forward(params, embed, x, input_size=INPUT_SIZE,
                                kernel_size=KERNEL, stride=STRIDE, hidden_size=HIDDEN)
    out = jax.block_until_ready(out)
    assert out.shape == (B, NUM_CLASSES, H, W), out.shape
    assert jnp.all(jnp.isfinite(out))
    print("KERNEL_OK")
</pallas_src>

<mosaic_0001>
module attributes {stable_mosaic.version = 11 : i64} {
  func.func @_linear_kernel(%arg0: i32, %arg1: memref<128x3xf32, #tpu.memory_space<vmem>>, %arg2: memref<3x16xbf16, #tpu.memory_space<vmem>>, %arg3: memref<1x16xf32, #tpu.memory_space<vmem>>, %arg4: memref<128x16xf32, #tpu.memory_space<vmem>>) attributes {dimension_semantics = [#tpu.dimension_semantics<parallel>], iteration_bounds = array<i64: 1>, scalar_prefetch = 0 : i64, scratch_operands = 0 : i64, tpu.core_type = #tpu.core_type<tc>, window_params = [{transform_indices = @transform_0, window_bounds = array<i64: 128, 3>}, {pipeline_mode = #tpu.pipeline_mode<synchronous>, transform_indices = @transform_1, window_bounds = array<i64: 3, 16>}, {pipeline_mode = #tpu.pipeline_mode<synchronous>, transform_indices = @transform_2, window_bounds = array<i64: 1, 16>}, {transform_indices = @transform_3, window_bounds = array<i64: 128, 16>}]} {
    %c0 = arith.constant 0 : index
    %c0_0 = arith.constant 0 : index
    %0 = vector.load %arg1[%c0, %c0_0] : memref<128x3xf32, #tpu.memory_space<vmem>>, vector<128x3xf32>
    %1 = arith.truncf %0 : vector<128x3xf32> to vector<128x3xbf16>
    %c0_1 = arith.constant 0 : index
    %c0_2 = arith.constant 0 : index
    %2 = vector.load %arg2[%c0_1, %c0_2] : memref<3x16xbf16, #tpu.memory_space<vmem>>, vector<3x16xbf16>
    %cst = arith.constant dense<0.000000e+00> : vector<128x16xf32>
    %3 = tpu.matmul %1, %2, %cst {dimension_numbers = #tpu.dot_dimension_numbers<[1], [0], [0], [1], [0, 0, 1, 1], [], []>} : vector<128x3xbf16>, vector<3x16xbf16>, vector<128x16xf32> -> vector<128x16xf32>
    %c0_3 = arith.constant 0 : index
    %c0_4 = arith.constant 0 : index
    %4 = vector.load %arg3[%c0_3, %c0_4] : memref<1x16xf32, #tpu.memory_space<vmem>>, vector<1x16xf32>
    %5 = vector.broadcast %4 : vector<1x16xf32> to vector<128x16xf32>
    %6 = arith.addf %3, %5 : vector<128x16xf32>
    %c0_5 = arith.constant 0 : index
    %c0_6 = arith.constant 0 : index
    %7 = vector.load %arg4[%c0_5, %c0_6] : memref<128x16xf32, #tpu.memory_space<vmem>>, vector<128x16xf32>
    tpu.vector_store %arg4[%c0_5, %c0_6], %6 {strides = array<i32>} : memref<128x16xf32, #tpu.memory_space<vmem>>, vector<128x16xf32>,
    return
  }
  func.func @transform_0(%arg0: i32) -> (i32, i32) {
    %c0_i32 = arith.constant 0 : i32
    %c0_i32_0 = arith.constant 0 : i32
    return %arg0, %c0_i32 : i32, i32
  }
  func.func @transform_1(%arg0: i32) -> (i32, i32) {
    %c0_i32 = arith.constant 0 : i32
    %c0_i32_0 = arith.constant 0 : i32
    %c0_i32_1 = arith.constant 0 : i32
    return %c0_i32, %c0_i32_0 : i32, i32
  }
  func.func @transform_2(%arg0: i32) -> (i32, i32) {
    %c0_i32 = arith.constant 0 : i32
    %c0_i32_0 = arith.constant 0 : i32
    %c0_i32_1 = arith.constant 0 : i32
    return %c0_i32, %c0_i32_0 : i32, i32
  }
  func.func @transform_3(%arg0: i32) -> (i32, i32) {
    %c0_i32 = arith.constant 0 : i32
    %c0_i32_0 = arith.constant 0 : i32
    return %arg0, %c0_i32 : i32, i32
  }
}

</mosaic_0001>

<llo_original>
// kernel: tpu_custom_call.1
$region0: #{tpu_custom_call.1}
  #allocation0 [shape = 'u32[]', space=smem, size = 0x4, offset = 0x4, fixed_abs, tag = 'smem constant byte address 0x4 - core index']
  #allocation1 [shape = 'u32[144,128]{1,0:T(1,128)}', space=vmem, size = 0x12000, scoped, tag = 'internal scratch']
  %s0 = inlined_call_operand.vmem [shape: f32[128,3], index: 0, kind: input, shape index: {}]
  %s1 = inlined_call_operand.vmem [shape: bf16[3,16], index: 1, kind: input, shape index: {}]
  %s2 = inlined_call_operand.vmem [shape: f32[1,16], index: 2, kind: input, shape index: {}]
  %s3 = inlined_call_operand.vmem [shape: f32[128,16], index: 3, kind: output, shape index: {}]
  %s4 = sld [smem:[#allocation0]]
  $region22: #{tpu_custom_call.1} parent=0
    _
  %s6 = ssub.s32 1, %s4
  %s7 = scalar_select 0, %s6, %s4
  // Predicated region
  $region2: #{tpu_custom_call.1} parent=0 // pred_check
    _
  $region3: #{tpu_custom_call.1} parent=0 // pred_check_branch
    %9 = sbr.rel (0) target = $region5
  $region4: #{tpu_custom_call.1} parent=0 // pred_region
    _
  $region5: #{tpu_custom_call.1} parent=0 // pred_fallthru
    _
  // Predicated region
  $region6: #{tpu_custom_call.1} parent=0 // pred_check
    _
  $region7: #{tpu_custom_call.1} parent=0 // pred_check_branch
    %11 = sbr.rel (0) target = $region9
  $region8: #{tpu_custom_call.1} parent=0 // pred_region
    _
  $region9: #{tpu_custom_call.1} parent=0 // pred_fallthru
    _
  // Predicated region
  $region10: #{tpu_custom_call.1} parent=0 // pred_check
    _
  $region11: #{tpu_custom_call.1} parent=0 // pred_check_branch
    %13 = sbr.rel (0) target = $region13
  $region12: #{tpu_custom_call.1} parent=0 // pred_region
    _
  $region13: #{tpu_custom_call.1} parent=0 // pred_fallthru
    _
  %v15 = vld [vmem:[%s0] sm:$0xff]
  %v16 = vld [vmem:[%s0 + $0x8] sm:$0xff]
  %v17 = vld [vmem:[%s0 + $0x10] sm:$0xff]
  %v18 = vld [vmem:[%s0 + $0x18] sm:$0xff]
  %v19 = vld [vmem:[%s0 + $0x20] sm:$0xff]
  %v20 = vld [vmem:[%s0 + $0x28] sm:$0xff]
  %v21 = vld [vmem:[%s0 + $0x30] sm:$0xff]
  %v22 = vld [vmem:[%s0 + $0x38] sm:$0xff]
  %v23 = vld [vmem:[%s0 + $0x40] sm:$0xff]
  %v24 = vld [vmem:[%s0 + $0x48] sm:$0xff]
  %v25 = vld [vmem:[%s0 + $0x50] sm:$0xff]
  %v26 = vld [vmem:[%s0 + $0x58] sm:$0xff]
  %v27 = vld [vmem:[%s0 + $0x60] sm:$0xff]
  %v28 = vld [vmem:[%s0 + $0x68] sm:$0xff]
  %v29 = vld [vmem:[%s0 + $0x70] sm:$0xff]
  %v30 = vld [vmem:[%s0 + $0x78] sm:$0xff]
  %v31 = vpack.c.bf16 %v16, %v15
  %v32 = vpack.c.bf16 %v18, %v17
  %v33 = vpack.c.bf16 %v20, %v19
  %v34 = vpack.c.bf16 %v22, %v21
  %v35 = vpack.c.bf16 %v24, %v23
  %v36 = vpack.c.bf16 %v26, %v25
  %v37 = vpack.c.bf16 %v28, %v27
  %v38 = vpack.c.bf16 %v30, %v29
  %v39 = vld [vmem:[%s1] sm:$0x3]
  %v40 = vld [vmem:[%s2] sm:$0x1]
  %v42 = vlaneseq
  %v43 = vshrl.u32 %v42, 7
  %v44 = vsub.s32 0, %v43
  %v45 = vrot.slane %v40, %v44
  %vm47 = vcmask 23552
  %v49 = vsel %vm47, %v31, 0
  %v52 = vsel %vm47, %v32, 0
  %v55 = vsel %vm47, %v33, 0
  %v58 = vsel %vm47, %v34, 0
  %v61 = vsel %vm47, %v35, 0
  %v64 = vsel %vm47, %v36, 0
  %v67 = vsel %vm47, %v37, 0
  %v70 = vsel %vm47, %v38, 0
  %vm72 = vcmask 1040384
  %vm73 = vcmask 1041408
  %v74 = vsel %vm72, 4294967295, 65535
  %v75 = vsel %vm73, %v74, 0
  %v77 = vand.u32 %v39, %v75
  %79 = vmatprep.subr.bf16.mxu0 0
  %80 = vmatpush1.bf16.msra.mxu0 0
  %81 = vmatprep.subr.bf16.mxu0 0
  %82 = vmatpush1.bf16.msra.mxu0 0
  %83 = vmatprep.subr.bf16.mxu0 0
  %84 = vmatpush1.bf16.msra.mxu0 0
  %85 = vmatprep.subr.bf16.mxu0 0
  %86 = vmatpush1.bf16.msra.mxu0 0
  %87 = vmatprep.subr.bf16.mxu0 0
  %88 = vmatpush1.bf16.msra.mxu0 0
  %89 = vmatprep.subr.bf16.mxu0 0
  %90 = vmatpush1.bf16.msra.mxu0 0
  %91 = vmatprep.subr.bf16.mxu0 0
  %92 = vmatpush1.bf16.msra.mxu0 0
  %93 = vmatprep.subr.bf16.mxu0 0
  %94 = vmatpush1.bf16.msra.mxu0 %v77
  %95 = vmatprep.subr.bf16.mxu0 0
  %96 = vmatpush2.bf16.msra.mxu0 0
  %97 = vmatprep.subr.bf16.mxu0 0
  %98 = vmatpush2.bf16.msra.mxu0 0
  %99 = vmatprep.subr.bf16.mxu0 0
  %100 = vmatpush2.bf16.msra.mxu0 0
  %101 = vmatprep.subr.bf16.mxu0 0
  %102 = vmatpush2.bf16.msra.mxu0 0
  %103 = vmatprep.subr.bf16.mxu0 0
  %104 = vmatpush2.bf16.msra.mxu0 0
  %105 = vmatprep.subr.bf16.mxu0 0
  %106 = vmatpush2.bf16.msra.mxu0 0
  %107 = vmatprep.subr.bf16.mxu0 0
  %108 = vmatpush2.bf16.msra.mxu0 0
  %109 = vmatprep.subr.bf16.mxu0 0
  %110 = vmatpush2.bf16.msra.mxu0 0
  %111 = vmatprep.mubr.bf16.mxu0 0
  %112 = vmatmul.mubr.bf16.gmra.mxu0 %v49
  %v113 = vpop.f32.mrf.mxu0
  %v114 = vadd.f32 %v45, %v113
  %v115 = vpop.f32.mrf.mxu0
  %v116 = vpop.f32.mrf.mxu0
  %v117 = vadd.f32 %v45, %v116
  %v118 = vpop.f32.mrf.mxu0
  %119 = vmatprep.mubr.bf16.mxu0 0
  %120 = vmatmul.mubr.bf16.gmra.mxu0 %v52
  %v121 = vpop.f32.mrf.mxu0
  %v122 = vadd.f32 %v45, %v121
  %v123 = vpop.f32.mrf.mxu0
  %v124 = vpop.f32.mrf.mxu0
  %v125 = vadd.f32 %v45, %v124
  %v126 = vpop.f32.mrf.mxu0
  %127 = vmatprep.mubr.bf16.mxu0 0
  %128 = vmatmul.mubr.bf16.gmra.mxu0 %v55
  %v129 = vpop.f32.mrf.mxu0
  %v130 = vadd.f32 %v45, %v129
  %v131 = vpop.f32.mrf.mxu0
  %v132 = vpop.f32.mrf.mxu0
  %v133 = vadd.f32 %v45, %v132
  %v134 = vpop.f32.mrf.mxu0
  %135 = vmatprep.mubr.bf16.mxu0 0
  %136 = vmatmul.mubr.bf16.gmra.mxu0 %v58
  %v137 = vpop.f32.mrf.mxu0
  %v138 = vadd.f32 %v45, %v137
  %v139 = vpop.f32.mrf.mxu0
  %v140 = vpop.f32.mrf.mxu0
  %v141 = vadd.f32 %v45, %v140
  %v142 = vpop.f32.mrf.mxu0
  %143 = vmatprep.mubr.bf16.mxu0 0
  %144 = vmatmul.mubr.bf16.gmra.mxu0 %v61
  %v145 = vpop.f32.mrf.mxu0
  %v146 = vadd.f32 %v45, %v145
  %v147 = vpop.f32.mrf.mxu0
  %v148 = vpop.f32.mrf.mxu0
  %v149 = vadd.f32 %v45, %v148
  %v150 = vpop.f32.mrf.mxu0
  %151 = vmatprep.mubr.bf16.mxu0 0
  %152 = vmatmul.mubr.bf16.gmra.mxu0 %v64
  %v153 = vpop.f32.mrf.mxu0
  %v154 = vadd.f32 %v45, %v153
  %v155 = vpop.f32.mrf.mxu0
  %v156 = vpop.f32.mrf.mxu0
  %v157 = vadd.f32 %v45, %v156
  %v158 = vpop.f32.mrf.mxu0
  %159 = vmatprep.mubr.bf16.mxu0 0
  %160 = vmatmul.mubr.bf16.gmra.mxu0 %v67
  %v161 = vpop.f32.mrf.mxu0
  %v162 = vadd.f32 %v45, %v161
  %v163 = vpop.f32.mrf.mxu0
  %v164 = vpop.f32.mrf.mxu0
  %v165 = vadd.f32 %v45, %v164
  %v166 = vpop.f32.mrf.mxu0
  %167 = vmatprep.mubr.bf16.mxu0 0
  %168 = vmatmul.mubr.bf16.gmra.mxu0 %v70
  %v169 = vpop.f32.mrf.mxu0
  %v170 = vadd.f32 %v45, %v169
  %v171 = vpop.f32.mrf.mxu0
  %v172 = vpop.f32.mrf.mxu0
  %v173 = vadd.f32 %v45, %v172
  %v174 = vpop.f32.mrf.mxu0
  %175 = vdwg.mxu0
  %vm176 = vcmask 130048
  %177 = vst.msk [vmem:[%s3] sm:$0xff] %vm176, %v114
  %178 = vst.msk [vmem:[%s3 + $0x8] sm:$0xff] %vm176, %v117
  %179 = vst.msk [vmem:[%s3 + $0x10] sm:$0xff] %vm176, %v122
  %180 = vst.msk [vmem:[%s3 + $0x18] sm:$0xff] %vm176, %v125
  %181 = vst.msk [vmem:[%s3 + $0x20] sm:$0xff] %vm176, %v130
  %182 = vst.msk [vmem:[%s3 + $0x28] sm:$0xff] %vm176, %v133
  %183 = vst.msk [vmem:[%s3 + $0x30] sm:$0xff] %vm176, %v138
  %184 = vst.msk [vmem:[%s3 + $0x38] sm:$0xff] %vm176, %v141
  %185 = vst.msk [vmem:[%s3 + $0x40] sm:$0xff] %vm176, %v146
  %186 = vst.msk [vmem:[%s3 + $0x48] sm:$0xff] %vm176, %v149
  %187 = vst.msk [vmem:[%s3 + $0x50] sm:$0xff] %vm176, %v154
  %188 = vst.msk [vmem:[%s3 + $0x58] sm:$0xff] %vm176, %v157
  %189 = vst.msk [vmem:[%s3 + $0x60] sm:$0xff] %vm176, %v162
  %190 = vst.msk [vmem:[%s3 + $0x68] sm:$0xff] %vm176, %v165
  %191 = vst.msk [vmem:[%s3 + $0x70] sm:$0xff] %vm176, %v170
  %192 = vst.msk [vmem:[%s3 + $0x78] sm:$0xff] %vm176, %v173
  // Predicated region
  $region14: #{tpu_custom_call.1} parent=0 // pred_check
    _
  $region15: #{tpu_custom_call.1} parent=0 // pred_check_branch
    %194 = sbr.rel (0) target = $region17
  $region16: #{tpu_custom_call.1} parent=0 // pred_region
    _
  $region17: #{tpu_custom_call.1} parent=0 // pred_fallthru
    _
  // Predicated region
  $region18: #{tpu_custom_call.1} parent=0 // pred_check
    _
  $region19: #{tpu_custom_call.1} parent=0 // pred_check_branch
    %196 = sbr.rel (0) target = $region21
  $region20: #{tpu_custom_call.1} parent=0 // pred_region
    _
  $region21: #{tpu_custom_call.1} parent=0 // pred_fallthru
    _

</llo_original>
